<compile_context>
chip_gen: v6e
topology: v6e:2x2x1
jax: 0.10.0
libtpu: 0.0.40
codegen_flags: <defaults>
</compile_context>

<pallas_src>
import jax
import jax.numpy as jnp
from jax.experimental import pallas as pl
from jax.experimental.pallas import tpu as pltpu

INPUT_SIZE = 200
HIDDEN1 = 256
HIDDEN2 = 128
OUTPUT_SIZE = 5


def mlp_kernel(x_ref, w1_ref, b1_ref, w2_ref, b2_ref, w3_ref, b3_ref, o_ref):
    # Cast x to the weight dtype *inside* the kernel (bf16 MXU fast path when
    # weights are pre-cast; no-op for f32 weights).  Accumulation is f32.
    x = x_ref[...].astype(w1_ref.dtype)
    h1 = jnp.dot(x, w1_ref[...], preferred_element_type=jnp.float32)
    h1 = jnp.maximum(h1 + b1_ref[...], 0.0)

    h2 = jnp.dot(h1.astype(w2_ref.dtype), w2_ref[...],
                 preferred_element_type=jnp.float32)
    h2 = jnp.maximum(h2 + b2_ref[...], 0.0)

    logits = jnp.dot(h2.astype(w3_ref.dtype), w3_ref[...],
                     preferred_element_type=jnp.float32)
    logits = logits + b3_ref[...]

    # Numerically stable softmax over the feature axis (PyTorch dim=1).
    # Exact divide: the approx reciprocal is not worth the accuracy loss on a
    # [tb, 5] tensor.
    m = jnp.max(logits, axis=-1, keepdims=True)
    e = jnp.exp(logits - m)
    probs = e / jnp.sum(e, axis=-1, keepdims=True)
    o_ref[...] = probs.astype(o_ref.dtype)


def _round_up(n, m):
    return ((n + m - 1) // m) * m


def prepare_params(params, compute_dtype=jnp.bfloat16):
    """Pre-cast the weight matrices ONCE to the MXU compute dtype.

    Biases stay float32 (they are added to f32 accumulators).  Keep the
    returned dict around instead of casting per call.
    """
    p = dict(params)
    for k in ("w1", "w2", "w3"):
        p[k] = params[k].astype(compute_dtype)
    return p


def mlp_forward(x, params, *, batch_tile=None):
    """x: [B, INPUT_SIZE]; params: transposed weights [in, out] + biases [1, out].

    batch_tile: rows per grid step (multiple of the sublane alignment).  Default
    picks up to 2048 rows but guarantees >= 2 grid steps when B permits (v7x
    megacore sharding + DMA/compute overlap).
    """
    B, D = x.shape
    assert D == INPUT_SIZE
    out_dtype = x.dtype

    # Sublane alignment of the batch-tile (8 rows for 32-bit x, 16 for 16-bit).
    align = 8 if jnp.dtype(x.dtype).itemsize >= 4 else 16

    # Only pad when B is smaller than one sublane tile (< align rows copied).
    if B < align:
        x = jnp.pad(x, ((0, align - B), (0, 0)))
        B_pad = align
    else:
        B_pad = B

    max_tb = (B_pad // align) * align          # largest aligned tile <= array rows
    if batch_tile is None:
        tb = min(2048, max_tb)
        # Guarantee >= 2 grid steps when possible: feeds both v7x TensorCores
        # and lets the x DMA double-buffer against compute.
        if max_tb >= 2 * align:
            tb = min(tb, _round_up(pl.cdiv(B_pad, 2), align), max_tb)
    else:
        assert batch_tile % align == 0, (
            f"batch_tile must be a multiple of {align} for dtype {x.dtype}")
        tb = min(batch_tile, max_tb)

    w1, b1 = params["w1"], params["b1"]  # [200,256], [1,256]
    w2, b2 = params["w2"], params["b2"]  # [256,128], [1,128]
    w3, b3 = params["w3"], params["b3"]  # [128,5],   [1,5]

    grid = (pl.cdiv(B_pad, tb),)
    # x / output tiled over the batch ("parallel" -> megacore sharding); the
    # last block may be partial (Pallas drops out-of-bounds stores and rows are
    # independent, so no padding pass over x is needed).  Weights & biases map
    # to block (0, 0) every step and stay VMEM-resident (~0.35 MB).
    out = pl.pallas_call(
        mlp_kernel,
        out_shape=jax.ShapeDtypeStruct((B_pad, OUTPUT_SIZE), out_dtype),
        grid_spec=pltpu.PrefetchScalarGridSpec(
            num_scalar_prefetch=0,
            grid=grid,
            in_specs=[
                pl.BlockSpec((tb, INPUT_SIZE), lambda i: (i, 0)),
                pl.BlockSpec((INPUT_SIZE, HIDDEN1), lambda i: (0, 0)),
                pl.BlockSpec((1, HIDDEN1), lambda i: (0, 0)),
                pl.BlockSpec((HIDDEN1, HIDDEN2), lambda i: (0, 0)),
                pl.BlockSpec((1, HIDDEN2), lambda i: (0, 0)),
                pl.BlockSpec((HIDDEN2, OUTPUT_SIZE), lambda i: (0, 0)),
                pl.BlockSpec((1, OUTPUT_SIZE), lambda i: (0, 0)),
            ],
            out_specs=pl.BlockSpec((tb, OUTPUT_SIZE), lambda i: (i, 0)),
        ),
        compiler_params=pltpu.CompilerParams(
            dimension_semantics=("parallel",),
            vmem_limit_bytes=32 * 1024 * 1024,   # headroom for tb=2048 on v5e
        ),
    )(x, w1, b1, w2, b2, w3, b3)

    return out[:B] if B_pad != B else out


def init_params(key):
    """Deterministic init mimicking nn.Linear (weights stored transposed [in, out])."""
    ks = jax.random.split(key, 6)

    def linear(kw, kb, fan_in, fan_out):
        bound = 1.0 / jnp.sqrt(fan_in)
        w = jax.random.uniform(kw, (fan_in, fan_out), jnp.float32, -bound, bound)
        b = jax.random.uniform(kb, (1, fan_out), jnp.float32, -bound, bound)
        return w, b

    w1, b1 = linear(ks[0], ks[1], INPUT_SIZE, HIDDEN1)
    w2, b2 = linear(ks[2], ks[3], HIDDEN1, HIDDEN2)
    w3, b3 = linear(ks[4], ks[5], HIDDEN2, OUTPUT_SIZE)
    return dict(w1=w1, b1=b1, w2=w2, b2=b2, w3=w3, b3=b3)


def mlp_reference(x, p):
    hp = jax.lax.Precision.HIGHEST
    h1 = jnp.maximum(jnp.dot(x, p["w1"], precision=hp) + p["b1"], 0.0)
    h2 = jnp.maximum(jnp.dot(h1, p["w2"], precision=hp) + p["b2"], 0.0)
    logits = jnp.dot(h2, p["w3"], precision=hp) + p["b3"]
    return jax.nn.softmax(logits, axis=1)


if __name__ == "__main__":
    key = jax.random.PRNGKey(0)
    kx, kp = jax.random.split(key)
    params = init_params(kp)               # f32 weights [in, out], biases [1, out]
    params_bf16 = prepare_params(params)   # pre-cast bf16 weights (cast exactly once)

    # 1) Small-shape correctness, f32 weights (f32 MXU path, exact softmax).
    B = 8
    x = jax.random.normal(kx, (B, INPUT_SIZE), jnp.float32)
    out = jax.block_until_ready(mlp_forward(x, params))
    ref = mlp_reference(x, params)
    assert out.shape == (B, OUTPUT_SIZE)
    assert jnp.allclose(out, ref, atol=1e-3, rtol=1e-3), "f32 path mismatch vs reference"
    assert jnp.allclose(jnp.sum(out, axis=1), 1.0, atol=1e-4), "softmax rows != 1"

    # 2) Multi-step grid with a partial last block (B=300, tile=128 -> 3 steps,
    #    last block only 44 valid rows), bf16-weight fast path, no padding pass.
    B2 = 300
    x2 = jax.random.normal(kx, (B2, INPUT_SIZE), jnp.float32)
    out2 = jax.block_until_ready(mlp_forward(x2, params_bf16, batch_tile=128))
    ref2 = mlp_reference(x2, params)
    assert out2.shape == (B2, OUTPUT_SIZE)
    assert jnp.allclose(out2, ref2, atol=2e-2, rtol=2e-2), "bf16 tiled path mismatch"
    assert jnp.allclose(jnp.sum(out2, axis=1), 1.0, atol=1e-4), "softmax rows != 1"

    # 3) Default tile selection (>= 2 grid steps for megacore), bf16 weights.
    out3 = jax.block_until_ready(mlp_forward(x2, params_bf16))
    assert out3.shape == (B2, OUTPUT_SIZE)
    assert jnp.allclose(out3, ref2, atol=2e-2, rtol=2e-2), "default-tile path mismatch"

    print("KERNEL_OK")
</pallas_src>

<mosaic_0001>
module attributes {stable_mosaic.version = 11 : i64} {
  func.func @mlp_kernel(%arg0: i32, %arg1: memref<8x200xf32, #tpu.memory_space<vmem>>, %arg2: memref<200x256xf32, #tpu.memory_space<vmem>>, %arg3: memref<1x256xf32, #tpu.memory_space<vmem>>, %arg4: memref<256x128xf32, #tpu.memory_space<vmem>>, %arg5: memref<1x128xf32, #tpu.memory_space<vmem>>, %arg6: memref<128x5xf32, #tpu.memory_space<vmem>>, %arg7: memref<1x5xf32, #tpu.memory_space<vmem>>, %arg8: memref<8x5xf32, #tpu.memory_space<vmem>>) attributes {dimension_semantics = [#tpu.dimension_semantics<parallel>], iteration_bounds = array<i64: 1>, scalar_prefetch = 0 : i64, scratch_operands = 0 : i64, tpu.core_type = #tpu.core_type<tc>, window_params = [{transform_indices = @transform_0, window_bounds = array<i64: 8, 200>}, {pipeline_mode = #tpu.pipeline_mode<synchronous>, transform_indices = @transform_1, window_bounds = array<i64: 200, 256>}, {pipeline_mode = #tpu.pipeline_mode<synchronous>, transform_indices = @transform_2, window_bounds = array<i64: 1, 256>}, {pipeline_mode = #tpu.pipeline_mode<synchronous>, transform_indices = @transform_3, window_bounds = array<i64: 256, 128>}, {pipeline_mode = #tpu.pipeline_mode<synchronous>, transform_indices = @transform_4, window_bounds = array<i64: 1, 128>}, {pipeline_mode = #tpu.pipeline_mode<synchronous>, transform_indices = @transform_5, window_bounds = array<i64: 128, 5>}, {pipeline_mode = #tpu.pipeline_mode<synchronous>, transform_indices = @transform_6, window_bounds = array<i64: 1, 5>}, {transform_indices = @transform_7, window_bounds = array<i64: 8, 5>}]} {
    %c0 = arith.constant 0 : index
    %c0_0 = arith.constant 0 : index
    %0 = vector.load %arg1[%c0, %c0_0] : memref<8x200xf32, #tpu.memory_space<vmem>>, vector<8x200xf32>
    %c0_1 = arith.constant 0 : index
    %c0_2 = arith.constant 0 : index
    %1 = vector.load %arg2[%c0_1, %c0_2] : memref<200x256xf32, #tpu.memory_space<vmem>>, vector<200x256xf32>
    %cst = arith.constant dense<0.000000e+00> : vector<8x256xf32>
    %2 = tpu.matmul %0, %1, %cst {dimension_numbers = #tpu.dot_dimension_numbers<[1], [0], [0], [1], [0, 0, 1, 1], [], []>} : vector<8x200xf32>, vector<200x256xf32>, vector<8x256xf32> -> vector<8x256xf32>
    %c0_3 = arith.constant 0 : index
    %c0_4 = arith.constant 0 : index
    %3 = vector.load %arg3[%c0_3, %c0_4] : memref<1x256xf32, #tpu.memory_space<vmem>>, vector<1x256xf32>
    %4 = vector.broadcast %3 : vector<1x256xf32> to vector<8x256xf32>
    %5 = arith.addf %2, %4 : vector<8x256xf32>
    %cst_5 = arith.constant 0.000000e+00 : f32
    %6 = vector.broadcast %cst_5 : f32 to vector<8x256xf32>
    %7 = arith.maximumf %5, %6 : vector<8x256xf32>
    %c0_6 = arith.constant 0 : index
    %c0_7 = arith.constant 0 : index
    %8 = vector.load %arg4[%c0_6, %c0_7] : memref<256x128xf32, #tpu.memory_space<vmem>>, vector<256x128xf32>
    %cst_8 = arith.constant dense<0.000000e+00> : vector<8x128xf32>
    %9 = tpu.matmul %7, %8, %cst_8 {dimension_numbers = #tpu.dot_dimension_numbers<[1], [0], [0], [1], [0, 0, 1, 1], [], []>} : vector<8x256xf32>, vector<256x128xf32>, vector<8x128xf32> -> vector<8x128xf32>
    %c0_9 = arith.constant 0 : index
    %c0_10 = arith.constant 0 : index
    %10 = vector.load %arg5[%c0_9, %c0_10] : memref<1x128xf32, #tpu.memory_space<vmem>>, vector<1x128xf32>
    %11 = vector.broadcast %10 : vector<1x128xf32> to vector<8x128xf32>
    %12 = arith.addf %9, %11 : vector<8x128xf32>
    %cst_11 = arith.constant 0.000000e+00 : f32
    %13 = vector.broadcast %cst_11 : f32 to vector<8x128xf32>
    %14 = arith.maximumf %12, %13 : vector<8x128xf32>
    %c0_12 = arith.constant 0 : index
    %c0_13 = arith.constant 0 : index
    %15 = vector.load %arg6[%c0_12, %c0_13] : memref<128x5xf32, #tpu.memory_space<vmem>>, vector<128x5xf32>
    %cst_14 = arith.constant dense<0.000000e+00> : vector<8x5xf32>
    %16 = tpu.matmul %14, %15, %cst_14 {dimension_numbers = #tpu.dot_dimension_numbers<[1], [0], [0], [1], [0, 0, 1, 1], [], []>} : vector<8x128xf32>, vector<128x5xf32>, vector<8x5xf32> -> vector<8x5xf32>
    %c0_15 = arith.constant 0 : index
    %c0_16 = arith.constant 0 : index
    %17 = vector.load %arg7[%c0_15, %c0_16] : memref<1x5xf32, #tpu.memory_space<vmem>>, vector<1x5xf32>
    %18 = vector.broadcast %17 : vector<1x5xf32> to vector<8x5xf32>
    %19 = arith.addf %16, %18 : vector<8x5xf32>
    %cst_17 = arith.constant dense<0xFF800000> : vector<8xf32>
    %20 = vector.multi_reduction <maximumf>, %19, %cst_17 [1] : vector<8x5xf32> to vector<8xf32>
    %21 = vector.shape_cast %20 : vector<8xf32> to vector<8x1xf32>
    %22 = vector.broadcast %21 : vector<8x1xf32> to vector<8x5xf32>
    %23 = arith.subf %19, %22 : vector<8x5xf32>
    %24 = math.exp %23 : vector<8x5xf32>
    %cst_18 = arith.constant dense<0.000000e+00> : vector<8xf32>
    %25 = vector.multi_reduction <add>, %24, %cst_18 [1] : vector<8x5xf32> to vector<8xf32>
    %26 = vector.shape_cast %25 : vector<8xf32> to vector<8x1xf32>
    %27 = vector.broadcast %26 : vector<8x1xf32> to vector<8x5xf32>
    %28 = arith.divf %24, %27 : vector<8x5xf32>
    %c0_19 = arith.constant 0 : index
    %c0_20 = arith.constant 0 : index
    %29 = vector.load %arg8[%c0_19, %c0_20] : memref<8x5xf32, #tpu.memory_space<vmem>>, vector<8x5xf32>
    tpu.vector_store %arg8[%c0_19, %c0_20], %28 {strides = array<i32>} : memref<8x5xf32, #tpu.memory_space<vmem>>, vector<8x5xf32>,
    return
  }
  func.func @transform_0(%arg0: i32) -> (i32, i32) {
    %c0_i32 = arith.constant 0 : i32
    %c0_i32_0 = arith.constant 0 : i32
    return %arg0, %c0_i32 : i32, i32
  }
  func.func @transform_1(%arg0: i32) -> (i32, i32) {
    %c0_i32 = arith.constant 0 : i32
    %c0_i32_0 = arith.constant 0 : i32
    %c0_i32_1 = arith.constant 0 : i32
    return %c0_i32, %c0_i32_0 : i32, i32
  }
  func.func @transform_2(%arg0: i32) -> (i32, i32) {
    %c0_i32 = arith.constant 0 : i32
    %c0_i32_0 = arith.constant 0 : i32
    %c0_i32_1 = arith.constant 0 : i32
    return %c0_i32, %c0_i32_0 : i32, i32
  }
  func.func @transform_3(%arg0: i32) -> (i32, i32) {
    %c0_i32 = arith.constant 0 : i32
    %c0_i32_0 = arith.constant 0 : i32
    %c0_i32_1 = arith.constant 0 : i32
    return %c0_i32, %c0_i32_0 : i32, i32
  }
  func.func @transform_4(%arg0: i32) -> (i32, i32) {
    %c0_i32 = arith.constant 0 : i32
    %c0_i32_0 = arith.constant 0 : i32
    %c0_i32_1 = arith.constant 0 : i32
    return %c0_i32, %c0_i32_0 : i32, i32
  }
  func.func @transform_5(%arg0: i32) -> (i32, i32) {
    %c0_i32 = arith.constant 0 : i32
    %c0_i32_0 = arith.constant 0 : i32
    %c0_i32_1 = arith.constant 0 : i32
    return %c0_i32, %c0_i32_0 : i32, i32
  }
  func.func @transform_6(%arg0: i32) -> (i32, i32) {
    %c0_i32 = arith.constant 0 : i32
    %c0_i32_0 = arith.constant 0 : i32
    %c0_i32_1 = arith.constant 0 : i32
    return %c0_i32, %c0_i32_0 : i32, i32
  }
  func.func @transform_7(%arg0: i32) -> (i32, i32) {
    %c0_i32 = arith.constant 0 : i32
    %c0_i32_0 = arith.constant 0 : i32
    return %arg0, %c0_i32 : i32, i32
  }
}

</mosaic_0001>

<llo_original>
// kernel: tpu_custom_call.1
$region0: #{tpu_custom_call.1}
  #allocation0 [shape = 'u32[]', space=smem, size = 0x4, offset = 0x4, fixed_abs, tag = 'smem constant byte address 0x4 - core index']
  #allocation1 [shape = 'u32[144,128]{1,0:T(1,128)}', space=vmem, size = 0x12000, scoped, tag = 'internal scratch']
  %s0 = inlined_call_operand.vmem [shape: f32[8,200], index: 0, kind: input, shape index: {}]
  %s1 = inlined_call_operand.hbm [shape: f32[200,256], index: 1, kind: input, shape index: {}]
  %s2 = inlined_call_operand.vmem [shape: f32[1,256], index: 2, kind: input, shape index: {}]
  %s3 = inlined_call_operand.hbm [shape: f32[256,128], index: 3, kind: input, shape index: {}]
  %s4 = inlined_call_operand.vmem [shape: f32[1,128], index: 4, kind: input, shape index: {}]
  %s5 = inlined_call_operand.vmem [shape: f32[128,5], index: 5, kind: input, shape index: {}]
  %s6 = inlined_call_operand.vmem [shape: f32[1,5], index: 6, kind: input, shape index: {}]
  %s7 = inlined_call_operand.hbm [shape: f32[8,5], index: 7, kind: output, shape index: {}]
  %s8 = sld [smem:[#allocation0]]
  $region46: #{tpu_custom_call.1} parent=0
    _
  %s10 = ssub.s32 1, %s8
  %s11 = scalar_select 0, %s10, %s8
  $region1: #{tpu_custom_call.1} parent=0
    #allocation2 [shape = 'u8[204800]{0}', space=vmem, size = 0x32000, scoped, tag = 'input window, operand 1, single buffered']
    #allocation3 [shape = 's32[1]{0}', space=sflag, size = 0x4, scoped, tag = 'scoped memory for tpu_custom_call.1']
    #allocation4 [shape = 's32[1]{0}', space=sflag, size = 0x4, scoped, tag = 'scoped memory for tpu_custom_call.1']
    #allocation5 [shape = 'u8[131072]{0}', space=vmem, size = 0x20000, scoped, tag = 'input window, operand 3, single buffered']
    #allocation6 [shape = 's32[1]{0}', space=sflag, size = 0x4, scoped, tag = 'scoped memory for tpu_custom_call.1']
    #allocation7 [shape = 'u8[4096]{0}', space=vmem, size = 0x1000, scoped, tag = 'output window, operand 0, single buffered']
    %12 = vsyncpa [#allocation3], 0
    %13 = vsyncpa [#allocation6], 0
    %14 = vsyncpa [#allocation4], 0
    // Predicated region
    $region2: #{tpu_custom_call.1} parent=1 // pred_check
      _
    $region3: #{tpu_custom_call.1} parent=1 // pred_check_branch
      %16 = sbr.rel (0) target = $region5
    $region4: #{tpu_custom_call.1} parent=1 // pred_region
      _
    $region5: #{tpu_custom_call.1} parent=1 // pred_fallthru
      _
    // Predicated region
    $region6: #{tpu_custom_call.1} parent=1 // pred_check
      _
    $region7: #{tpu_custom_call.1} parent=1 // pred_check_branch
      %18 = sbr.rel (0) target = $region9
    $region8: #{tpu_custom_call.1} parent=1 // pred_region
      %s20 = ssub.s32 6400, 6400
      %21 = vsyncadd [#allocation3], %s20
      %s22 = sshll.u32 [#allocation2], 4
      %s23 = int_to_ptr.vmem [resolvable:$true] %s22
      %28 = dma.hbm_to_vmem [thread:$0]  %s1, 6400, %s23, [#allocation3], 256, 256, 16
    $region9: #{tpu_custom_call.1} parent=1 // pred_fallthru
      _
    // Predicated region
    $region10: #{tpu_custom_call.1} parent=1 // pred_check
      _
    $region11: #{tpu_custom_call.1} parent=1 // pred_check_branch
      %30 = sbr.rel (0) target = $region13
    $region12: #{tpu_custom_call.1} parent=1 // pred_region
      _
    $region13: #{tpu_custom_call.1} parent=1 // pred_fallthru
      _
    // Predicated region
    $region14: #{tpu_custom_call.1} parent=1 // pred_check
      _
    $region15: #{tpu_custom_call.1} parent=1 // pred_check_branch
      %32 = sbr.rel (0) target = $region17
    $region16: #{tpu_custom_call.1} parent=1 // pred_region
      %s34 = ssub.s32 4096, 4096
      %35 = vsyncadd [#allocation6], %s34
      %s36 = sshll.u32 [#allocation5], 4
      %s37 = int_to_ptr.vmem [resolvable:$true] %s36
      %42 = dma.hbm_to_vmem [thread:$0]  %s3, 4096, %s37, [#allocation6], 128, 128, 8
    $region17: #{tpu_custom_call.1} parent=1 // pred_fallthru
      _
    // Predicated region
    $region18: #{tpu_custom_call.1} parent=1 // pred_check
      _
    $region19: #{tpu_custom_call.1} parent=1 // pred_check_branch
      %44 = sbr.rel (0) target = $region21
    $region20: #{tpu_custom_call.1} parent=1 // pred_region
      _
    $region21: #{tpu_custom_call.1} parent=1 // pred_fallthru
      _
    // Predicated region
    $region22: #{tpu_custom_call.1} parent=1 // pred_check
      _
    $region23: #{tpu_custom_call.1} parent=1 // pred_check_branch
      %46 = sbr.rel (0) target = $region25
    $region24: #{tpu_custom_call.1} parent=1 // pred_region
      _
    $region25: #{tpu_custom_call.1} parent=1 // pred_fallthru
      _
    // Predicated region
    $region26: #{tpu_custom_call.1} parent=1 // pred_check
      _
    $region27: #{tpu_custom_call.1} parent=1 // pred_check_branch
      %48 = sbr.rel (0) target = $region29
    $region28: #{tpu_custom_call.1} parent=1 // pred_region
      _
    $region29: #{tpu_custom_call.1} parent=1 // pred_fallthru
      _
    // Predicated region
    $region30: #{tpu_custom_call.1} parent=1 // pred_check
      _
    $region31: #{tpu_custom_call.1} parent=1 // pred_check_branch
      %50 = sbr.rel (0) target = $region33
    $region32: #{tpu_custom_call.1} parent=1 // pred_region
      %51 = dma.done [#allocation3], 6400
    $region33: #{tpu_custom_call.1} parent=1 // pred_fallthru
      _
    // Predicated region
    $region34: #{tpu_custom_call.1} parent=1 // pred_check
      _
    $region35: #{tpu_custom_call.1} parent=1 // pred_check_branch
      %53 = sbr.rel (0) target = $region37
    $region36: #{tpu_custom_call.1} parent=1 // pred_region
      %54 = dma.done [#allocation6], 4096
    $region37: #{tpu_custom_call.1} parent=1 // pred_fallthru
      _
    %v55 = vld [vmem:[%s0] sm:$0xff]
    %v56 = vld [vmem:[%s0 + $0x8] sm:$0xff]
    %v57 = vld [vmem:[#allocation2] sm:$0xff]
    %v58 = vld [vmem:[#allocation2 + $0x8] sm:$0xff]
    %v59 = vld [vmem:[#allocation2 + $0x10] sm:$0xff]
    %v60 = vld [vmem:[#allocation2 + $0x18] sm:$0xff]
    %v61 = vld [vmem:[#allocation2 + $0x20] sm:$0xff]
    %v62 = vld [vmem:[#allocation2 + $0x28] sm:$0xff]
    %v63 = vld [vmem:[#allocation2 + $0x30] sm:$0xff]
    %v64 = vld [vmem:[#allocation2 + $0x38] sm:$0xff]
    %v65 = vld [vmem:[#allocation2 + $0x40] sm:$0xff]
    %v66 = vld [vmem:[#allocation2 + $0x48] sm:$0xff]
    %v67 = vld [vmem:[#allocation2 + $0x50] sm:$0xff]
    %v68 = vld [vmem:[#allocation2 + $0x58] sm:$0xff]
    %v69 = vld [vmem:[#allocation2 + $0x60] sm:$0xff]
    %v70 = vld [vmem:[#allocation2 + $0x68] sm:$0xff]
    %v71 = vld [vmem:[#allocation2 + $0x70] sm:$0xff]
    %v72 = vld [vmem:[#allocation2 + $0x78] sm:$0xff]
    %v73 = vld [vmem:[#allocation2 + $0x80] sm:$0xff]
    %v74 = vld [vmem:[#allocation2 + $0x88] sm:$0xff]
    %v75 = vld [vmem:[#allocation2 + $0x90] sm:$0xff]
    %v76 = vld [vmem:[#allocation2 + $0x98] sm:$0xff]
    %v77 = vld [vmem:[#allocation2 + $0xa0] sm:$0xff]
    %v78 = vld [vmem:[#allocation2 + $0xa8] sm:$0xff]
    %v79 = vld [vmem:[#allocation2 + $0xb0] sm:$0xff]
    %v80 = vld [vmem:[#allocation2 + $0xb8] sm:$0xff]
    %v81 = vld [vmem:[#allocation2 + $0xc0] sm:$0xff]
    %v82 = vld [vmem:[#allocation2 + $0xc8] sm:$0xff]
    %v83 = vld [vmem:[#allocation2 + $0xd0] sm:$0xff]
    %v84 = vld [vmem:[#allocation2 + $0xd8] sm:$0xff]
    %v85 = vld [vmem:[#allocation2 + $0xe0] sm:$0xff]
    %v86 = vld [vmem:[#allocation2 + $0xe8] sm:$0xff]
    %v87 = vld [vmem:[#allocation2 + $0xf0] sm:$0xff]
    %v88 = vld [vmem:[#allocation2 + $0xf8] sm:$0xff]
    %v89 = vld [vmem:[#allocation2 + $0x100] sm:$0xff]
    %v90 = vld [vmem:[#allocation2 + $0x108] sm:$0xff]
    %v91 = vld [vmem:[#allocation2 + $0x110] sm:$0xff]
    %v92 = vld [vmem:[#allocation2 + $0x118] sm:$0xff]
    %v93 = vld [vmem:[#allocation2 + $0x120] sm:$0xff]
    %v94 = vld [vmem:[#allocation2 + $0x128] sm:$0xff]
    %v95 = vld [vmem:[#allocation2 + $0x130] sm:$0xff]
    %v96 = vld [vmem:[#allocation2 + $0x138] sm:$0xff]
    %v97 = vld [vmem:[#allocation2 + $0x140] sm:$0xff]
    %v98 = vld [vmem:[#allocation2 + $0x148] sm:$0xff]
    %v99 = vld [vmem:[#allocation2 + $0x150] sm:$0xff]
    %v100 = vld [vmem:[#allocation2 + $0x158] sm:$0xff]
    %v101 = vld [vmem:[#allocation2 + $0x160] sm:$0xff]
    %v102 = vld [vmem:[#allocation2 + $0x168] sm:$0xff]
    %v103 = vld [vmem:[#allocation2 + $0x170] sm:$0xff]
    %v104 = vld [vmem:[#allocation2 + $0x178] sm:$0xff]
    %v105 = vld [vmem:[#allocation2 + $0x180] sm:$0xff]
    %v106 = vld [vmem:[#allocation2 + $0x188] sm:$0xff]
    %v107 = vld [vmem:[%s2] sm:$0x3]
    %v109 = vlaneseq
    %v110 = vshrl.u32 %v109, 7
    %v111 = vsub.s32 0, %v110
    %v112 = vrot.slane %v107, %v111
    %v113 = vlaneseq
    %v114 = vshrl.u32 %v113, 7
    %v115 = vsub.s32 1, %v114
    %v116 = vrot.slane %v107, %v115
    %vm119 = vcmask 588800
    %v121 = vsel %vm119, %v56, 0
    %123 = vmatprep.subr.mxu0 %v88
    %124 = vmatpush1.msra.mxu0 %v87
    %125 = vmatprep.subr.mxu0 %v86
    %126 = vmatpush1.msra.mxu0 %v85
    %127 = vmatprep.subr.mxu0 %v84
    %128 = vmatpush1.msra.mxu0 %v83
    %129 = vmatprep.subr.mxu0 %v82
    %130 = vmatpush1.msra.mxu0 %v81
    %131 = vmatprep.subr.mxu0 %v80
    %132 = vmatpush1.msra.mxu0 %v79
    %133 = vmatprep.subr.mxu0 %v78
    %134 = vmatpush1.msra.mxu0 %v77
    %135 = vmatprep.subr.mxu0 %v76
    %136 = vmatpush1.msra.mxu0 %v75
    %137 = vmatprep.subr.mxu0 %v74
    %138 = vmatpush1.msra.mxu0 %v73
    %139 = vmatprep.subr.mxu0 %v72
    %140 = vmatpush1.msra.mxu0 %v71
    %141 = vmatprep.subr.mxu0 %v70
    %142 = vmatpush1.msra.mxu0 %v69
    %143 = vmatprep.subr.mxu0 %v68
    %144 = vmatpush1.msra.mxu0 %v67
    %145 = vmatprep.subr.mxu0 %v66
    %146 = vmatpush1.msra.mxu0 %v65
    %147 = vmatprep.subr.mxu0 %v64
    %148 = vmatpush1.msra.mxu0 %v63
    %149 = vmatprep.subr.mxu0 %v62
    %150 = vmatpush1.msra.mxu0 %v61
    %151 = vmatprep.subr.mxu0 %v60
    %152 = vmatpush1.msra.mxu0 %v59
    %153 = vmatprep.subr.mxu0 %v58
    %154 = vmatpush1.msra.mxu0 %v57
    %155 = vmatprep.subr.mxu0 0.0
    %156 = vmatpush2.msra.mxu0 0.0
    %157 = vmatprep.subr.mxu0 0.0
    %158 = vmatpush2.msra.mxu0 0.0
    %159 = vmatprep.subr.mxu0 0.0
    %160 = vmatpush2.msra.mxu0 0.0
    %161 = vmatprep.subr.mxu0 0.0
    %162 = vmatpush2.msra.mxu0 0.0
    %163 = vmatprep.subr.mxu0 0.0
    %164 = vmatpush2.msra.mxu0 0.0
    %165 = vmatprep.subr.mxu0 0.0
    %166 = vmatpush2.msra.mxu0 0.0
    %167 = vmatprep.subr.mxu0 0.0
    %168 = vmatpush2.msra.mxu0 0.0
    %169 = vmatprep.subr.mxu0 %v106
    %170 = vmatpush2.msra.mxu0 %v105
    %171 = vmatprep.subr.mxu0 %v104
    %172 = vmatpush2.msra.mxu0 %v103
    %173 = vmatprep.subr.mxu0 %v102
    %174 = vmatpush2.msra.mxu0 %v101
    %175 = vmatprep.subr.mxu0 %v100
    %176 = vmatpush2.msra.mxu0 %v99
    %177 = vmatprep.subr.mxu0 %v98
    %178 = vmatpush2.msra.mxu0 %v97
    %179 = vmatprep.subr.mxu0 %v96
    %180 = vmatpush2.msra.mxu0 %v95
    %181 = vmatprep.subr.mxu0 %v94
    %182 = vmatpush2.msra.mxu0 %v93
    %183 = vmatprep.subr.mxu0 %v92
    %184 = vmatpush2.msra.mxu0 %v91
    %185 = vmatprep.subr.mxu0 %v90
    %186 = vmatpush2.msra.mxu0 %v89
    %187 = vmatprep.mubr.f32.mxu0 %v121
    %188 = vmatmul.mubr.f32.gmra.mxu0 %v55
    %v189 = vpop.f32.mrf.mxu0
    %v190 = vadd.f32 %v112, %v189
    %v191 = vpop.f32.mrf.mxu0
    %v192 = vadd.f32 %v116, %v191
    %193 = vdwg.mxu0
    %v194 = vmax.f32 %v190, 0.0
    %v195 = vmax.f32 %v192, 0.0
    %v196 = vld [vmem:[#allocation5] sm:$0xff]
    %v197 = vld [vmem:[#allocation5 + $0x8] sm:$0xff]
    %v198 = vld [vmem:[#allocation5 + $0x10] sm:$0xff]
    %v199 = vld [vmem:[#allocation5 + $0x18] sm:$0xff]
    %v200 = vld [vmem:[#allocation5 + $0x20] sm:$0xff]
    %v201 = vld [vmem:[#allocation5 + $0x28] sm:$0xff]
    %v202 = vld [vmem:[#allocation5 + $0x30] sm:$0xff]
    %v203 = vld [vmem:[#allocation5 + $0x38] sm:$0xff]
    %v204 = vld [vmem:[#allocation5 + $0x40] sm:$0xff]
    %v205 = vld [vmem:[#allocation5 + $0x48] sm:$0xff]
    %v206 = vld [vmem:[#allocation5 + $0x50] sm:$0xff]
    %v207 = vld [vmem:[#allocation5 + $0x58] sm:$0xff]
    %v208 = vld [vmem:[#allocation5 + $0x60] sm:$0xff]
    %v209 = vld [vmem:[#allocation5 + $0x68] sm:$0xff]
    %v210 = vld [vmem:[#allocation5 + $0x70] sm:$0xff]
    %v211 = vld [vmem:[#allocation5 + $0x78] sm:$0xff]
    %v212 = vld [vmem:[#allocation5 + $0x80] sm:$0xff]
    %v213 = vld [vmem:[#allocation5 + $0x88] sm:$0xff]
    %v214 = vld [vmem:[#allocation5 + $0x90] sm:$0xff]
    %v215 = vld [vmem:[#allocation5 + $0x98] sm:$0xff]
    %v216 = vld [vmem:[#allocation5 + $0xa0] sm:$0xff]
    %v217 = vld [vmem:[#allocation5 + $0xa8] sm:$0xff]
    %v218 = vld [vmem:[#allocation5 + $0xb0] sm:$0xff]
    %v219 = vld [vmem:[#allocation5 + $0xb8] sm:$0xff]
    %v220 = vld [vmem:[#allocation5 + $0xc0] sm:$0xff]
    %v221 = vld [vmem:[#allocation5 + $0xc8] sm:$0xff]
    %v222 = vld [vmem:[#allocation5 + $0xd0] sm:$0xff]
    %v223 = vld [vmem:[#allocation5 + $0xd8] sm:$0xff]
    %v224 = vld [vmem:[#allocation5 + $0xe0] sm:$0xff]
    %v225 = vld [vmem:[#allocation5 + $0xe8] sm:$0xff]
    %v226 = vld [vmem:[#allocation5 + $0xf0] sm:$0xff]
    %v227 = vld [vmem:[#allocation5 + $0xf8] sm:$0xff]
    %v228 = vld [vmem:[%s4] sm:$0x1]
    %v230 = vlaneseq
    %v231 = vshrl.u32 %v230, 7
    %v232 = vsub.s32 0, %v231
    %v233 = vrot.slane %v228, %v232
    %235 = vmatprep.subr.mxu0 0.0
    %236 = vmatpush1.msra.mxu0 %v211
    %237 = vmatprep.subr.mxu0 0.0
    %238 = vmatpush1.msra.mxu0 %v210
    %239 = vmatprep.subr.mxu0 0.0
    %240 = vmatpush1.msra.mxu0 %v209
    %241 = vmatprep.subr.mxu0 0.0
    %242 = vmatpush1.msra.mxu0 %v208
    %243 = vmatprep.subr.mxu0 0.0
    %244 = vmatpush1.msra.mxu0 %v207
    %245 = vmatprep.subr.mxu0 0.0
    %246 = vmatpush1.msra.mxu0 %v206
    %247 = vmatprep.subr.mxu0 0.0
    %248 = vmatpush1.msra.mxu0 %v205
    %249 = vmatprep.subr.mxu0 0.0
    %250 = vmatpush1.msra.mxu0 %v204
    %251 = vmatprep.subr.mxu0 0.0
    %252 = vmatpush1.msra.mxu0 %v203
    %253 = vmatprep.subr.mxu0 0.0
    %254 = vmatpush1.msra.mxu0 %v202
    %255 = vmatprep.subr.mxu0 0.0
    %256 = vmatpush1.msra.mxu0 %v201
    %257 = vmatprep.subr.mxu0 0.0
    %258 = vmatpush1.msra.mxu0 %v200
    %259 = vmatprep.subr.mxu0 0.0
    %260 = vmatpush1.msra.mxu0 %v199
    %261 = vmatprep.subr.mxu0 0.0
    %262 = vmatpush1.msra.mxu0 %v198
    %263 = vmatprep.subr.mxu0 0.0
    %264 = vmatpush1.msra.mxu0 %v197
    %265 = vmatprep.subr.mxu0 0.0
    %266 = vmatpush1.msra.mxu0 %v196
    %267 = vmatprep.subr.mxu0 0.0
    %268 = vmatpush2.msra.mxu0 %v227
    %269 = vmatprep.subr.mxu0 0.0
    %270 = vmatpush2.msra.mxu0 %v226
    %271 = vmatprep.subr.mxu0 0.0
    %272 = vmatpush2.msra.mxu0 %v225
    %273 = vmatprep.subr.mxu0 0.0
    %274 = vmatpush2.msra.mxu0 %v224
    %275 = vmatprep.subr.mxu0 0.0
    %276 = vmatpush2.msra.mxu0 %v223
    %277 = vmatprep.subr.mxu0 0.0
    %278 = vmatpush2.msra.mxu0 %v222
    %279 = vmatprep.subr.mxu0 0.0
    %280 = vmatpush2.msra.mxu0 %v221
    %281 = vmatprep.subr.mxu0 0.0
    %282 = vmatpush2.msra.mxu0 %v220
    %283 = vmatprep.subr.mxu0 0.0
    %284 = vmatpush2.msra.mxu0 %v219
    %285 = vmatprep.subr.mxu0 0.0
    %286 = vmatpush2.msra.mxu0 %v218
    %287 = vmatprep.subr.mxu0 0.0
    %288 = vmatpush2.msra.mxu0 %v217
    %289 = vmatprep.subr.mxu0 0.0
    %290 = vmatpush2.msra.mxu0 %v216
    %291 = vmatprep.subr.mxu0 0.0
    %292 = vmatpush2.msra.mxu0 %v215
    %293 = vmatprep.subr.mxu0 0.0
    %294 = vmatpush2.msra.mxu0 %v214
    %295 = vmatprep.subr.mxu0 0.0
    %296 = vmatpush2.msra.mxu0 %v213
    %297 = vmatprep.subr.mxu0 0.0
    %298 = vmatpush2.msra.mxu0 %v212
    %299 = vmatprep.mubr.f32.mxu0 %v195
    %300 = vmatmul.mubr.f32.gmra.mxu0 %v194
    %v301 = vpop.f32.mrf.mxu0
    %v302 = vadd.f32 %v233, %v301
    %v303 = vpop.f32.mrf.mxu0
    %304 = vdwg.mxu0
    %v305 = vmax.f32 %v302, 0.0
    %v306 = vld [vmem:[%s5] sm:$0xff]
    %v307 = vld [vmem:[%s5 + $0x8] sm:$0xff]
    %v308 = vld [vmem:[%s5 + $0x10] sm:$0xff]
    %v309 = vld [vmem:[%s5 + $0x18] sm:$0xff]
    %v310 = vld [vmem:[%s5 + $0x20] sm:$0xff]
    %v311 = vld [vmem:[%s5 + $0x28] sm:$0xff]
    %v312 = vld [vmem:[%s5 + $0x30] sm:$0xff]
    %v313 = vld [vmem:[%s5 + $0x38] sm:$0xff]
    %v314 = vld [vmem:[%s5 + $0x40] sm:$0xff]
    %v315 = vld [vmem:[%s5 + $0x48] sm:$0xff]
    %v316 = vld [vmem:[%s5 + $0x50] sm:$0xff]
    %v317 = vld [vmem:[%s5 + $0x58] sm:$0xff]
    %v318 = vld [vmem:[%s5 + $0x60] sm:$0xff]
    %v319 = vld [vmem:[%s5 + $0x68] sm:$0xff]
    %v320 = vld [vmem:[%s5 + $0x70] sm:$0xff]
    %v321 = vld [vmem:[%s5 + $0x78] sm:$0xff]
    %v322 = vld [vmem:[%s6] sm:$0x1]
    %v324 = vlaneseq
    %v325 = vshrl.u32 %v324, 7
    %v326 = vsub.s32 0, %v325
    %v327 = vrot.slane %v322, %v326
    %329 = vmatprep.subr.mxu0 0.0
    %330 = vmatpush1.msra.mxu0 %v321
    %331 = vmatprep.subr.mxu0 0.0
    %332 = vmatpush1.msra.mxu0 %v320
    %333 = vmatprep.subr.mxu0 0.0
    %334 = vmatpush1.msra.mxu0 %v319
    %335 = vmatprep.subr.mxu0 0.0
    %336 = vmatpush1.msra.mxu0 %v318
    %337 = vmatprep.subr.mxu0 0.0
    %338 = vmatpush1.msra.mxu0 %v317
    %339 = vmatprep.subr.mxu0 0.0
    %340 = vmatpush1.msra.mxu0 %v316
    %341 = vmatprep.subr.mxu0 0.0
    %342 = vmatpush1.msra.mxu0 %v315
    %343 = vmatprep.subr.mxu0 0.0
    %344 = vmatpush1.msra.mxu0 %v314
    %345 = vmatprep.subr.mxu0 0.0
    %346 = vmatpush1.msra.mxu0 %v313
    %347 = vmatprep.subr.mxu0 0.0
    %348 = vmatpush1.msra.mxu0 %v312
    %349 = vmatprep.subr.mxu0 0.0
    %350 = vmatpush1.msra.mxu0 %v311
    %351 = vmatprep.subr.mxu0 0.0
    %352 = vmatpush1.msra.mxu0 %v310
    %353 = vmatprep.subr.mxu0 0.0
    %354 = vmatpush1.msra.mxu0 %v309
    %355 = vmatprep.subr.mxu0 0.0
    %356 = vmatpush1.msra.mxu0 %v308
    %357 = vmatprep.subr.mxu0 0.0
    %358 = vmatpush1.msra.mxu0 %v307
    %359 = vmatprep.subr.mxu0 0.0
    %360 = vmatpush1.msra.mxu0 %v306
    %361 = vmatprep.subr.mxu0 0.0
    %362 = vmatpush2.msra.mxu0 0.0
    %363 = vmatprep.subr.mxu0 0.0
    %364 = vmatpush2.msra.mxu0 0.0
    %365 = vmatprep.subr.mxu0 0.0
    %366 = vmatpush2.msra.mxu0 0.0
    %367 = vmatprep.subr.mxu0 0.0
    %368 = vmatpush2.msra.mxu0 0.0
    %369 = vmatprep.subr.mxu0 0.0
    %370 = vmatpush2.msra.mxu0 0.0
    %371 = vmatprep.subr.mxu0 0.0
    %372 = vmatpush2.msra.mxu0 0.0
    %373 = vmatprep.subr.mxu0 0.0
    %374 = vmatpush2.msra.mxu0 0.0
    %375 = vmatprep.subr.mxu0 0.0
    %376 = vmatpush2.msra.mxu0 0.0
    %377 = vmatprep.subr.mxu0 0.0
    %378 = vmatpush2.msra.mxu0 0.0
    %379 = vmatprep.subr.mxu0 0.0
    %380 = vmatpush2.msra.mxu0 0.0
    %381 = vmatprep.subr.mxu0 0.0
    %382 = vmatpush2.msra.mxu0 0.0
    %383 = vmatprep.subr.mxu0 0.0
    %384 = vmatpush2.msra.mxu0 0.0
    %385 = vmatprep.subr.mxu0 0.0
    %386 = vmatpush2.msra.mxu0 0.0
    %387 = vmatprep.subr.mxu0 0.0
    %388 = vmatpush2.msra.mxu0 0.0
    %389 = vmatprep.subr.mxu0 0.0
    %390 = vmatpush2.msra.mxu0 0.0
    %391 = vmatprep.subr.mxu0 0.0
    %392 = vmatpush2.msra.mxu0 0.0
    %393 = vmatprep.mubr.f32.mxu0 0.0
    %394 = vmatmul.mubr.f32.gmra.mxu0 %v305
    %v395 = vpop.f32.mrf.mxu0
    %v396 = vadd.f32 %v327, %v395
    %v397 = vpop.f32.mrf.mxu0
    %398 = vdwg.mxu0
    %vm399 = vcmask 39936
    %v400 = vsel %vm399, %v396, -inf
    %401 = vmax.xlane.f32.xlu0 %v400
    %v402 = vpop.xlane.xlu0 %401
    %v403 = vsub.f32 %v396, %v402
    %v404 = vmul.f32 %v403, 1.442695
    %v405 = vpow.pop %v404
    %v406 = vsel %vm399, %v405, 0.0
    %407 = vadd.xlane.f32.xlu0 %v406
    %v408 = vpop.xlane.xlu0 %407
    %v409 = vrcp.pop %v408
    %v410 = vmul.f32 %v405, %v409
    %411 = vst.msk [vmem:[#allocation7] sm:$0xff] %vm399, %v410
    // Predicated region
    $region38: #{tpu_custom_call.1} parent=1 // pred_check
      _
    $region39: #{tpu_custom_call.1} parent=1 // pred_check_branch
      %413 = sbr.rel (0) target = $region41
    $region40: #{tpu_custom_call.1} parent=1 // pred_region
      %s415 = ssub.s32 128, 128
      %416 = vsyncadd [#allocation4], %s415
      %s418 = sshll.u32 [#allocation7], 4
      %s419 = int_to_ptr.vmem [resolvable:$true] %s418
      %421 = dma.vmem_to_hbm [thread:$0]  %s419, 128, %s7, [#allocation4]
    $region41: #{tpu_custom_call.1} parent=1 // pred_fallthru
      _
    // Predicated region
    $region42: #{tpu_custom_call.1} parent=1 // pred_check
      _
    $region43: #{tpu_custom_call.1} parent=1 // pred_check_branch
      %423 = sbr.rel (0) target = $region45
    $region44: #{tpu_custom_call.1} parent=1 // pred_region
      %424 = dma.done [#allocation4], 128
    $region45: #{tpu_custom_call.1} parent=1 // pred_fallthru
      _
    %425 = vsyncpa [#allocation3], 1
    %426 = vsyncpa [#allocation6], 1
    %427 = vsyncpa [#allocation4], 1

</llo_original>
